<compile_context>
chip_gen: v7x
topology: tpu7x:2x2x1
jax: 0.10.0
libtpu: 0.0.40
codegen_flags: <defaults>
</compile_context>

<pallas_src>
import jax
import jax.numpy as jnp
from jax.experimental import pallas as pl
from jax.experimental.pallas import tpu as pltpu


def _copy_kernel(x_ref, o_ref):
    # Identity copy of one lane-dense slab — all the "compute" Flatten has.
    o_ref[...] = x_ref[...]


def _tiled_copy_2d(x2d, target_block_bytes=2 << 20):
    """Materializing copy of a 2-D array with full-sublane, multi-MiB blocks."""
    r, c = x2d.shape
    itemsize = jnp.dtype(x2d.dtype).itemsize

    # Rows per block: multiple of 8, sized for ~target_block_bytes per block.
    rows = max(8, (target_block_bytes // max(1, c * itemsize)) // 8 * 8)
    if r <= rows or r <= 8:
        # Single block along rows; block dims equal the full array dims, so the
        # (8,128) divisibility constraint does not apply.
        rows = r
        grid = (1,)
    else:
        # Prefer a multiple-of-8 divisor of r to avoid a ragged, masked last
        # block (vst.msk partial stores); otherwise accept cdiv + masking.
        d = rows
        while d > 8 and r % d != 0:
            d -= 8
        if r % d == 0:
            rows = d
        grid = (pl.cdiv(r, rows),)

    return pl.pallas_call(
        _copy_kernel,
        out_shape=jax.ShapeDtypeStruct((r, c), x2d.dtype),
        grid_spec=pltpu.PrefetchScalarGridSpec(
            num_scalar_prefetch=0,
            grid=grid,
            in_specs=[pl.BlockSpec((rows, c), lambda i: (i, 0))],
            out_specs=pl.BlockSpec((rows, c), lambda i: (i, 0)),
        ),
        compiler_params=pltpu.CompilerParams(
            # Independent row blocks: lets v7x's 2 TensorCores split the copy;
            # a no-op on single-TC v5e/v6e.
            dimension_semantics=("parallel",),
        ),
    )(x2d)


def flatten(x, he_mode=False, materialize=False):
    """Equivalent of torch.flatten(x, start_dim=1)."""
    if he_mode:
        # Matches the PyTorch module: in HE mode the input passes through.
        return x

    n = x.shape[0]
    flat = 1
    for d in x.shape[1:]:
        flat *= d

    # Row-major reshape == torch.flatten(x, 1) on contiguous NCHW. This is a
    # free metadata view — the fastest possible "kernel" is not running one.
    x2 = jnp.reshape(x, (n, flat))
    if not materialize:
        return x2

    # Materializing Pallas copy: re-view the contiguous buffer as a
    # lane-dense slab (cols = largest multiple of 128 <= 4096 dividing total)
    # so every vreg uses all 8 sublanes and blocks are MiB-scale.
    total = n * flat
    c = None
    for cand in range(4096, 0, -128):
        if total % cand == 0:
            c = cand
            break

    if c is not None:
        out = _tiled_copy_2d(jnp.reshape(x2, (total // c, c)))
    else:
        # Rare fallback (total not divisible by 128): copy the (n, flat) view
        # directly; the last block dim equals the full array dim, so it is
        # still a legal (unmasked-where-possible) layout.
        out = _tiled_copy_2d(x2)

    return jnp.reshape(out, (n, flat))


if __name__ == "__main__":
    key = jax.random.PRNGKey(0)
    # Small NCHW input consistent with a conv-net feature map.
    x = jax.random.normal(key, (2, 4, 16, 16), dtype=jnp.float32)
    expected = jnp.reshape(x, (x.shape[0], -1))

    # Default (zero-copy) path: pure metadata reshape, no kernel launched.
    out_view = jax.block_until_ready(flatten(x))
    assert out_view.shape == (2, 4 * 16 * 16), out_view.shape
    assert bool(jnp.array_equal(out_view, expected))

    # Materializing Pallas path (exercises the kernel).
    out = jax.block_until_ready(flatten(x, materialize=True))
    assert out.shape == (2, 4 * 16 * 16), out.shape
    assert out.dtype == x.dtype
    assert bool(jnp.array_equal(out, expected))

    # Odd-shaped input exercises the non-128-divisible fallback path.
    y = jax.random.normal(key, (2, 3, 5, 7), dtype=jnp.float32)
    out_y = jax.block_until_ready(flatten(y, materialize=True))
    assert out_y.shape == (2, 3 * 5 * 7)
    assert bool(jnp.array_equal(out_y, jnp.reshape(y, (2, -1))))

    # he_mode path: identity.
    out_he = jax.block_until_ready(flatten(x, he_mode=True))
    assert out_he.shape == x.shape
    assert bool(jnp.array_equal(out_he, x))

    print("KERNEL_OK")
</pallas_src>

<mosaic_0001>
module attributes {stable_mosaic.version = 11 : i64} {
  func.func @_copy_kernel(%arg0: i32, %arg1: memref<1x2048xf32, #tpu.memory_space<vmem>>, %arg2: memref<1x2048xf32, #tpu.memory_space<vmem>>) attributes {dimension_semantics = [#tpu.dimension_semantics<parallel>], iteration_bounds = array<i64: 1>, scalar_prefetch = 0 : i64, scratch_operands = 0 : i64, tpu.core_type = #tpu.core_type<tc>, window_params = [{transform_indices = @transform_0, window_bounds = array<i64: 1, 2048>}, {transform_indices = @transform_1, window_bounds = array<i64: 1, 2048>}]} {
    %c0 = arith.constant 0 : index
    %c0_0 = arith.constant 0 : index
    %0 = vector.load %arg1[%c0, %c0_0] : memref<1x2048xf32, #tpu.memory_space<vmem>>, vector<1x2048xf32>
    %c0_1 = arith.constant 0 : index
    %c0_2 = arith.constant 0 : index
    %1 = vector.load %arg2[%c0_1, %c0_2] : memref<1x2048xf32, #tpu.memory_space<vmem>>, vector<1x2048xf32>
    tpu.vector_store %arg2[%c0_1, %c0_2], %0 {strides = array<i32>} : memref<1x2048xf32, #tpu.memory_space<vmem>>, vector<1x2048xf32>,
    return
  }
  func.func @transform_0(%arg0: i32) -> (i32, i32) {
    %c0_i32 = arith.constant 0 : i32
    %c0_i32_0 = arith.constant 0 : i32
    return %arg0, %c0_i32 : i32, i32
  }
  func.func @transform_1(%arg0: i32) -> (i32, i32) {
    %c0_i32 = arith.constant 0 : i32
    %c0_i32_0 = arith.constant 0 : i32
    return %arg0, %c0_i32 : i32, i32
  }
}

</mosaic_0001>

<llo_original>
// kernel: tpu_custom_call.1
$region0: #{tpu_custom_call.1}
  #allocation0 [shape = 'u32[]', space=smem, size = 0x4, offset = 0x4, fixed_abs, tag = 'smem constant byte address 0x4 - core index']
  #allocation1 [shape = 'u32[144,128]{1,0:T(1,128)}', space=vmem, size = 0x12000, scoped, tag = 'internal scratch']
  %s0 = inlined_call_operand.hbm [shape: f32[1,2048], index: 0, kind: input, shape index: {}]
  %s1 = inlined_call_operand.hbm [shape: f32[1,2048], index: 1, kind: output, shape index: {}]
  %s2 = sld [smem:[#allocation0]]
  $region18: #{tpu_custom_call.1} parent=0
    _
  %s4 = ssub.s32 1, %s2
  %s5 = scalar_select 0, %s4, %s2
  $region1: #{tpu_custom_call.1} parent=0
    #allocation2 [shape = 'u8[8192]{0}', space=vmem, size = 0x2000, scoped, tag = 'input window, operand 0, single buffered']
    #allocation3 [shape = 's32[1]{0}', space=sflag, size = 0x4, scoped, tag = 'scoped memory for tpu_custom_call.1']
    #allocation4 [shape = 's32[1]{0}', space=sflag, size = 0x4, scoped, tag = 'scoped memory for tpu_custom_call.1']
    #allocation5 [shape = 'u8[8192]{0}', space=vmem, size = 0x2000, scoped, tag = 'output window, operand 0, single buffered']
    %6 = vsyncpa [#allocation3], 0
    %7 = vsyncpa [#allocation4], 0
    // Predicated region
    $region2: #{tpu_custom_call.1} parent=1 // pred_check
      _
    $region3: #{tpu_custom_call.1} parent=1 // pred_check_branch
      %9 = sbr.rel (0) target = $region5
    $region4: #{tpu_custom_call.1} parent=1 // pred_region
      %s11 = ssub.s32 256, 256
      %12 = vsyncadd [#allocation3], %s11
      %s14 = sshll.u32 [#allocation2], 4
      %s15 = int_to_ptr.vmem [resolvable:$true] %s14
      %17 = dma.hbm_to_vmem [thread:$0]  %s0, 256, %s15, [#allocation3]
    $region5: #{tpu_custom_call.1} parent=1 // pred_fallthru
      _
    // Predicated region
    $region6: #{tpu_custom_call.1} parent=1 // pred_check
      _
    $region7: #{tpu_custom_call.1} parent=1 // pred_check_branch
      %19 = sbr.rel (0) target = $region9
    $region8: #{tpu_custom_call.1} parent=1 // pred_region
      %20 = dma.done [#allocation3], 256
    $region9: #{tpu_custom_call.1} parent=1 // pred_fallthru
      _
    %v21 = vld [vmem:[#allocation2] sm:$0xff]
    %v22 = vld [vmem:[#allocation2 + $0x8] sm:$0xff]
    %23 = vst [vmem:[#allocation5] sm:$0xff] %v21
    %24 = vst [vmem:[#allocation5 + $0x8] sm:$0xff] %v22
    // Predicated region
    $region10: #{tpu_custom_call.1} parent=1 // pred_check
      _
    $region11: #{tpu_custom_call.1} parent=1 // pred_check_branch
      %26 = sbr.rel (0) target = $region13
    $region12: #{tpu_custom_call.1} parent=1 // pred_region
      %s28 = ssub.s32 256, 256
      %29 = vsyncadd [#allocation4], %s28
      %s31 = sshll.u32 [#allocation5], 4
      %s32 = int_to_ptr.vmem [resolvable:$true] %s31
      %34 = dma.vmem_to_hbm [thread:$0]  %s32, 256, %s1, [#allocation4]
    $region13: #{tpu_custom_call.1} parent=1 // pred_fallthru
      _
    // Predicated region
    $region14: #{tpu_custom_call.1} parent=1 // pred_check
      _
    $region15: #{tpu_custom_call.1} parent=1 // pred_check_branch
      %36 = sbr.rel (0) target = $region17
    $region16: #{tpu_custom_call.1} parent=1 // pred_region
      %37 = dma.done [#allocation4], 256
    $region17: #{tpu_custom_call.1} parent=1 // pred_fallthru
      _
    %38 = vsyncpa [#allocation3], 1
    %39 = vsyncpa [#allocation4], 1

</llo_original>
